<compile_context>
chip_gen: v7x
topology: tpu7x:2x2x1
jax: 0.10.0
libtpu: 0.0.40
codegen_flags: <defaults>
</compile_context>

<pallas_src>
import functools

import jax
import jax.numpy as jnp
from jax.experimental import pallas as pl
from jax.experimental.pallas import tpu as pltpu

LANE = 128
SUBLANE = 8


def _round_up(x, m):
    return ((x + m - 1) // m) * m


def _sublane_multiple(dtype):
    """Native sublane tiling multiple for a dtype (f32->8, bf16->16, int8->32)."""
    itemsize = jnp.dtype(dtype).itemsize
    return SUBLANE * max(1, 4 // max(1, itemsize))


def _auto_config():
    """Generation-aware (tile_rows, num_parts) defaults.

    Per-step VMEM for f32 inputs = tile_rows * 128 * 4 B * 2 inputs * 2 bufs:
      * v5e : 4096 rows ->  8 MiB (default scoped VMEM 16 MiB), 1 TC
      * v6e : 8192 rows -> 16 MiB (default scoped VMEM 32 MiB), 1 TC
      * v7x : 8192 rows -> 16 MiB (default scoped VMEM 32 MiB), 2 TCs ->
              split the stream into two partial sums
    """
    try:
        kind = jax.devices()[0].device_kind.lower()
    except Exception:  # pragma: no cover - defensive
        kind = ""
    if "v5" in kind:
        return 4096, 1
    if "v6" in kind:
        return 8192, 1
    if "7" in kind:
        return 8192, 2
    return 4096, 1


def _rmse_partial_kernel(yhat_ref, y_ref, out_ref, *, rows, tile_rows,
                         blocks_per_part, emit_mask_branch):
    p = pl.program_id(0)   # partial-sum index ("parallel"; v7x core split)
    i = pl.program_id(1)   # block index within this partial (reduction)

    @pl.when(i == 0)
    def _():
        out_ref[...] = jnp.zeros_like(out_ref)

    def accumulate(mask):
        # Cast after the load so HBM traffic stays at the native input width.
        d = yhat_ref[...].astype(jnp.float32) - y_ref[...].astype(jnp.float32)
        if mask is not None:
            d = jnp.where(mask, d, jnp.float32(0.0))
        sq = d * d
        # Sublane-aligned partial reduction: (tile_rows, 128) -> (G, 8, 128),
        # sum over G (pure vreg adds on the VPU), accumulate into the resident
        # (8, 128) output tile.
        out_ref[...] += jnp.sum(
            sq.reshape(tile_rows // SUBLANE, SUBLANE, LANE), axis=0)

    if not emit_mask_branch:
        accumulate(None)
    else:
        # Runtime-gated masking: only blocks that overhang the real row range
        # (last partial block, phantom blocks of an uneven part split) pay for
        # the iota + where; interior blocks take the cheap unmasked path.
        row0 = (p * blocks_per_part + i) * tile_rows
        is_full = row0 + tile_rows <= rows

        @pl.when(is_full)
        def _():
            accumulate(None)

        @pl.when(jnp.logical_not(is_full))
        def _():
            ridx = row0 + jax.lax.broadcasted_iota(
                jnp.int32, (tile_rows, LANE), 0)
            accumulate(ridx < rows)


def _rmse_partial_sums(yhat2d, y2d, tile_rows, num_parts):
    rows = yhat2d.shape[0]

    auto_tile, auto_parts = _auto_config()
    if tile_rows is None:
        tile_rows = auto_tile
    if num_parts is None:
        num_parts = auto_parts

    # Round the block's sublane dim to the native tiling of the input dtypes
    # so sub-32-bit inputs (bf16/int8/fp8) do not force a relayout.
    sub = max(_sublane_multiple(yhat2d.dtype), _sublane_multiple(y2d.dtype))
    tile_rows = max(sub, min(int(tile_rows), _round_up(rows, sub)))
    tile_rows = _round_up(tile_rows, sub)

    nblocks = pl.cdiv(rows, tile_rows)

    # Partial-sum split only where it can help (two TensorCores on v7x).
    num_parts = max(1, min(int(num_parts), nblocks))
    blocks_per_part = pl.cdiv(nblocks, num_parts)

    # Mask branch is only compiled in when the logical
    # (parts x blocks x tile_rows) grid overhangs the real row count.
    emit_mask_branch = (num_parts * blocks_per_part * tile_rows) != rows

    def in_index_map(p, i):
        # Clamp phantom blocks (past the end of the row range) onto the last
        # real block; their contribution is masked to zero inside the kernel.
        return (jnp.minimum(p * blocks_per_part + i, nblocks - 1), 0)

    kernel = functools.partial(
        _rmse_partial_kernel, rows=rows, tile_rows=tile_rows,
        blocks_per_part=blocks_per_part, emit_mask_branch=emit_mask_branch)

    return pl.pallas_call(
        kernel,
        out_shape=jax.ShapeDtypeStruct((num_parts, SUBLANE, LANE),
                                       jnp.float32),
        grid_spec=pltpu.PrefetchScalarGridSpec(
            num_scalar_prefetch=0,
            grid=(num_parts, blocks_per_part),
            in_specs=[
                pl.BlockSpec((tile_rows, LANE), in_index_map),
                pl.BlockSpec((tile_rows, LANE), in_index_map),
            ],
            out_specs=pl.BlockSpec((None, SUBLANE, LANE),
                                   lambda p, i: (p, 0, 0)),
        ),
        compiler_params=pltpu.CompilerParams(
            # TODO(synk): on v7x verify the leading "parallel" axis actually
            # shards across both TensorCores; otherwise switch to CORE_PARALLEL.
            dimension_semantics=("parallel", "arbitrary"),
        ),
    )(yhat2d, y2d)


def rmse_loss(yhat, y, eps=1e-8, tile_rows=None, num_parts=None):
    """sqrt(mean((yhat - y)**2) + eps), matching the PyTorch RMSELoss module."""
    assert yhat.shape == y.shape, "yhat and y must have the same shape"
    n = int(yhat.size)
    assert n > 0

    yflat = yhat.reshape(-1)
    tflat = y.reshape(-1)

    rows = n // LANE
    n_bulk = rows * LANE

    total = jnp.float32(0.0)

    if n_bulk > 0:
        yb, tb = yflat, tflat
        if n_bulk != n:
            # No jnp.pad full-copy: stream the 128-aligned bulk through the
            # kernel; the (<128-element) tail is folded in the epilogue below.
            yb = yflat[:n_bulk]
            tb = tflat[:n_bulk]
        partials = _rmse_partial_sums(yb.reshape(rows, LANE),
                                      tb.reshape(rows, LANE),
                                      tile_rows, num_parts)
        total = total + jnp.sum(partials)

    if n_bulk != n:
        dt = (yflat[n_bulk:].astype(jnp.float32)
              - tflat[n_bulk:].astype(jnp.float32))
        total = total + jnp.sum(dt * dt)

    # Tiny epilogue: mean, +eps, sqrt.
    return jnp.sqrt(total / jnp.float32(n) + jnp.float32(eps))


if __name__ == "__main__":
    key = jax.random.PRNGKey(0)
    k1, k2 = jax.random.split(key)

    def _ref(a, b, eps=1e-8):
        return jnp.sqrt(jnp.mean((a - b) ** 2) + eps)

    # 1) Main demo: small shape consistent with a regression loss on NCHW
    #    activations; element count is a multiple of 128 (zero-copy path).
    shape = (2, 4, 16, 16)
    yhat = jax.random.normal(k1, shape, dtype=jnp.float32)
    y = jax.random.normal(k2, shape, dtype=jnp.float32)
    loss = jax.block_until_ready(rmse_loss(yhat, y, eps=1e-8))
    assert jnp.allclose(loss, _ref(yhat, y), rtol=1e-6, atol=1e-6), \
        (loss, _ref(yhat, y))

    # 2) Row count not a multiple of the tile: exercises the runtime-gated
    #    mask branch on the single overhanging block.
    shape_mask = (2, 4, 20, 16)   # 2560 elems -> 20 rows, tile rounds to 24
    a = jax.random.normal(k1, shape_mask, dtype=jnp.float32)
    b = jax.random.normal(k2, shape_mask, dtype=jnp.float32)
    loss_m = jax.block_until_ready(rmse_loss(a, b))
    assert jnp.allclose(loss_m, _ref(a, b), rtol=1e-6, atol=1e-6), \
        (loss_m, _ref(a, b))

    # 3) Element count below one lane row: tail-only epilogue path (no pad).
    shape_tail = (3, 5, 7)        # 105 elems < 128
    c = jax.random.normal(k1, shape_tail, dtype=jnp.float32)
    d = jax.random.normal(k2, shape_tail, dtype=jnp.float32)
    loss_t = jax.block_until_ready(rmse_loss(c, d))
    assert jnp.allclose(loss_t, _ref(c, d), rtol=1e-6, atol=1e-6), \
        (loss_t, _ref(c, d))

    print("KERNEL_OK")
</pallas_src>

<mosaic_0001>
module attributes {stable_mosaic.version = 11 : i64} {
  func.func @_rmse_partial_kernel(%arg0: i32, %arg1: i32, %arg2: memref<16x128xf32, #tpu.memory_space<vmem>>, %arg3: memref<16x128xf32, #tpu.memory_space<vmem>>, %arg4: memref<1x8x128xf32, #tpu.memory_space<vmem>>) attributes {dimension_semantics = [#tpu.dimension_semantics<parallel>, #tpu.dimension_semantics<arbitrary>], iteration_bounds = array<i64: 1, 1>, scalar_prefetch = 0 : i64, scratch_operands = 0 : i64, tpu.core_type = #tpu.core_type<tc>, window_params = [{transform_indices = @transform_0, window_bounds = array<i64: 16, 128>}, {transform_indices = @transform_1, window_bounds = array<i64: 16, 128>}, {transform_indices = @transform_2, window_bounds = array<i64: 1, 8, 128>}]} {
    %c0_i32 = arith.constant 0 : i32
    %0 = arith.cmpi eq, %arg1, %c0_i32 : i32
    %1 = arith.extui %0 : i1 to i32
    %c0_i32_0 = arith.constant 0 : i32
    %2 = arith.cmpi ne, %1, %c0_i32_0 : i32
    scf.if %2 {
      %cst_10 = arith.constant 0.000000e+00 : f32
      %15 = vector.broadcast %cst_10 : f32 to vector<8x128xf32>
      %c0_11 = arith.constant 0 : index
      %c0_12 = arith.constant 0 : index
      %c0_13 = arith.constant 0 : index
      %16 = vector.load %arg4[%c0_11, %c0_12, %c0_13] : memref<1x8x128xf32, #tpu.memory_space<vmem>>, vector<1x8x128xf32>
      %17 = vector.shape_cast %16 : vector<1x8x128xf32> to vector<8x128xf32>
      %18 = vector.shape_cast %15 : vector<8x128xf32> to vector<1x8x128xf32>
      tpu.vector_store %arg4[%c0_11, %c0_12, %c0_13], %18 {strides = array<i32>} : memref<1x8x128xf32, #tpu.memory_space<vmem>>, vector<1x8x128xf32>,
    } else {
    }
    %c0 = arith.constant 0 : index
    %c0_1 = arith.constant 0 : index
    %3 = vector.load %arg2[%c0, %c0_1] : memref<16x128xf32, #tpu.memory_space<vmem>>, vector<16x128xf32>
    %c0_2 = arith.constant 0 : index
    %c0_3 = arith.constant 0 : index
    %4 = vector.load %arg3[%c0_2, %c0_3] : memref<16x128xf32, #tpu.memory_space<vmem>>, vector<16x128xf32>
    %5 = arith.subf %3, %4 : vector<16x128xf32>
    %6 = arith.mulf %5, %5 : vector<16x128xf32>
    %c0_4 = arith.constant 0 : index
    %c0_5 = arith.constant 0 : index
    %c0_6 = arith.constant 0 : index
    %7 = vector.load %arg4[%c0_4, %c0_5, %c0_6] : memref<1x8x128xf32, #tpu.memory_space<vmem>>, vector<1x8x128xf32>
    %8 = vector.shape_cast %7 : vector<1x8x128xf32> to vector<8x128xf32>
    %9 = vector.shape_cast %6 : vector<16x128xf32> to vector<2x8x128xf32>
    %cst = arith.constant dense<0.000000e+00> : vector<8x128xf32>
    %10 = vector.multi_reduction <add>, %9, %cst [0] : vector<2x8x128xf32> to vector<8x128xf32>
    %11 = arith.addf %8, %10 : vector<8x128xf32>
    %c0_7 = arith.constant 0 : index
    %c0_8 = arith.constant 0 : index
    %c0_9 = arith.constant 0 : index
    %12 = vector.load %arg4[%c0_7, %c0_8, %c0_9] : memref<1x8x128xf32, #tpu.memory_space<vmem>>, vector<1x8x128xf32>
    %13 = vector.shape_cast %12 : vector<1x8x128xf32> to vector<8x128xf32>
    %14 = vector.shape_cast %11 : vector<8x128xf32> to vector<1x8x128xf32>
    tpu.vector_store %arg4[%c0_7, %c0_8, %c0_9], %14 {strides = array<i32>} : memref<1x8x128xf32, #tpu.memory_space<vmem>>, vector<1x8x128xf32>,
    return
  }
  func.func @transform_0(%arg0: i32, %arg1: i32) -> (i32, i32) {
    %c1_i32 = arith.constant 1 : i32
    %0 = arith.muli %arg0, %c1_i32 : i32
    %1 = arith.addi %0, %arg1 : i32
    %c0_i32 = arith.constant 0 : i32
    %2 = arith.minsi %1, %c0_i32 : i32
    %c0_i32_0 = arith.constant 0 : i32
    %c0_i32_1 = arith.constant 0 : i32
    return %2, %c0_i32_0 : i32, i32
  }
  func.func @transform_1(%arg0: i32, %arg1: i32) -> (i32, i32) {
    %c1_i32 = arith.constant 1 : i32
    %0 = arith.muli %arg0, %c1_i32 : i32
    %1 = arith.addi %0, %arg1 : i32
    %c0_i32 = arith.constant 0 : i32
    %2 = arith.minsi %1, %c0_i32 : i32
    %c0_i32_0 = arith.constant 0 : i32
    %c0_i32_1 = arith.constant 0 : i32
    return %2, %c0_i32_0 : i32, i32
  }
  func.func @transform_2(%arg0: i32, %arg1: i32) -> (i32, i32, i32) {
    %c0_i32 = arith.constant 0 : i32
    %c0_i32_0 = arith.constant 0 : i32
    %c0_i32_1 = arith.constant 0 : i32
    return %arg0, %c0_i32, %c0_i32_0 : i32, i32, i32
  }
}

</mosaic_0001>

<llo_original>
// kernel: tpu_custom_call.1
$region0: #{tpu_custom_call.1}
  #allocation0 [shape = 'u32[]', space=smem, size = 0x4, offset = 0x4, fixed_abs, tag = 'smem constant byte address 0x4 - core index']
  #allocation1 [shape = 'u32[144,128]{1,0:T(1,128)}', space=vmem, size = 0x12000, scoped, tag = 'internal scratch']
  %s0 = inlined_call_operand.hbm [shape: f32[16,128], index: 0, kind: input, shape index: {}]
  %s1 = inlined_call_operand.hbm [shape: f32[16,128], index: 1, kind: input, shape index: {}]
  %s2 = inlined_call_operand.hbm [shape: f32[1,8,128], index: 2, kind: output, shape index: {}]
  %s3 = sld [smem:[#allocation0]]
  $region30: #{tpu_custom_call.1} parent=0
    _
  %s5 = ssub.s32 1, %s3
  %s6 = scalar_select 0, %s5, %s3
  $region1: #{tpu_custom_call.1} parent=0
    #allocation2 [shape = 'u8[8192]{0}', space=vmem, size = 0x2000, scoped, tag = 'input window, operand 0, single buffered']
    #allocation3 [shape = 's32[1]{0}', space=sflag, size = 0x4, scoped, tag = 'scoped memory for tpu_custom_call.1']
    #allocation4 [shape = 's32[1]{0}', space=sflag, size = 0x4, scoped, tag = 'scoped memory for tpu_custom_call.1']
    #allocation5 [shape = 'u8[8192]{0}', space=vmem, size = 0x2000, scoped, tag = 'input window, operand 1, single buffered']
    #allocation6 [shape = 's32[1]{0}', space=sflag, size = 0x4, scoped, tag = 'scoped memory for tpu_custom_call.1']
    #allocation7 [shape = 'u8[4096]{0}', space=vmem, size = 0x1000, scoped, tag = 'output window, operand 0, single buffered']
    %7 = vsyncpa [#allocation3], 0
    %8 = vsyncpa [#allocation6], 0
    %9 = vsyncpa [#allocation4], 0
    // Predicated region
    $region2: #{tpu_custom_call.1} parent=1 // pred_check
      _
    $region3: #{tpu_custom_call.1} parent=1 // pred_check_branch
      %11 = sbr.rel (0) target = $region5
    $region4: #{tpu_custom_call.1} parent=1 // pred_region
      %s12 = sadd.s32 0, 0
      %p13 = scmp.lt.s32.totalorder %s12, 0
      %s14 = scalar_select %p13, %s12, 0
      %s15 = smul.u32 2, %s14
      %s17 = ssub.s32 256, 256
      %18 = vsyncadd [#allocation3], %s17
      %s19 = smul.addr %s15, 128
      %s20 = scalar_lea.hbm %s0, %s19
      %s21 = sshll.u32 [#allocation2], 4
      %s22 = int_to_ptr.vmem [resolvable:$true] %s21
      %27 = dma.hbm_to_vmem [thread:$0]  %s20, 256, %s22, [#allocation3], 128, 128, 8
    $region5: #{tpu_custom_call.1} parent=1 // pred_fallthru
      _
    // Predicated region
    $region6: #{tpu_custom_call.1} parent=1 // pred_check
      _
    $region7: #{tpu_custom_call.1} parent=1 // pred_check_branch
      %29 = sbr.rel (0) target = $region9
    $region8: #{tpu_custom_call.1} parent=1 // pred_region
      %s30 = sadd.s32 0, 0
      %p31 = scmp.lt.s32.totalorder %s30, 0
      %s32 = scalar_select %p31, %s30, 0
      %s33 = smul.u32 2, %s32
      %s35 = ssub.s32 256, 256
      %36 = vsyncadd [#allocation6], %s35
      %s37 = smul.addr %s33, 128
      %s38 = scalar_lea.hbm %s1, %s37
      %s39 = sshll.u32 [#allocation5], 4
      %s40 = int_to_ptr.vmem [resolvable:$true] %s39
      %45 = dma.hbm_to_vmem [thread:$0]  %s38, 256, %s40, [#allocation6], 128, 128, 8
    $region9: #{tpu_custom_call.1} parent=1 // pred_fallthru
      _
    // Predicated region
    $region10: #{tpu_custom_call.1} parent=1 // pred_check
      _
    $region11: #{tpu_custom_call.1} parent=1 // pred_check_branch
      %47 = sbr.rel (0) target = $region13
    $region12: #{tpu_custom_call.1} parent=1 // pred_region
      %48 = dma.done [#allocation3], 256
    $region13: #{tpu_custom_call.1} parent=1 // pred_fallthru
      _
    // Predicated region
    $region14: #{tpu_custom_call.1} parent=1 // pred_check
      _
    $region15: #{tpu_custom_call.1} parent=1 // pred_check_branch
      %50 = sbr.rel (0) target = $region17
    $region16: #{tpu_custom_call.1} parent=1 // pred_region
      %51 = dma.done [#allocation6], 256
    $region17: #{tpu_custom_call.1} parent=1 // pred_fallthru
      _
    %s52 = sadd.s32 0, 0
    %p53 = scmp.lt.s32.totalorder %s52, 0
    %s54 = scalar_select %p53, %s52, 0
    %s55 = smul.u32 2, %s54
    %s56 = sadd.s32 0, 0
    %p57 = scmp.lt.s32.totalorder %s56, 0
    %s58 = scalar_select %p57, %s56, 0
    %s59 = smul.u32 2, %s58
    %p60 = scmp.eq.s32.totalorder 0, 0
    // Predicated region
    $region18: #{tpu_custom_call.1} parent=1 // pred_check
      %p61 = pneg %p60
    $region19: #{tpu_custom_call.1} parent=1 // pred_check_branch
      %63 = sbr.rel (%p61) target = $region21
    $region20: #{tpu_custom_call.1} parent=1 // pred_region
      %64 = vst [vmem:[#allocation7] sm:$0xff] 0.0
    $region21: #{tpu_custom_call.1} parent=1 // pred_fallthru
      _
    %v65 = vld [vmem:[#allocation2] sm:$0xff]
    %v66 = vld [vmem:[#allocation2 + $0x8] sm:$0xff]
    %v67 = vld [vmem:[#allocation5] sm:$0xff]
    %v68 = vld [vmem:[#allocation5 + $0x8] sm:$0xff]
    %v69 = vsub.f32 %v65, %v67
    %v70 = vsub.f32 %v66, %v68
    %v71 = vmul.f32 %v69, %v69
    %v72 = vmul.f32 %v70, %v70
    %v73 = vld [vmem:[#allocation7] sm:$0xff]
    %v74 = vadd.f32 %v71, %v72
    %v75 = vadd.f32 %v73, %v74
    %76 = vst [vmem:[#allocation7] sm:$0xff] %v75
    // Predicated region
    $region22: #{tpu_custom_call.1} parent=1 // pred_check
      _
    $region23: #{tpu_custom_call.1} parent=1 // pred_check_branch
      %78 = sbr.rel (0) target = $region25
    $region24: #{tpu_custom_call.1} parent=1 // pred_region
      %s80 = ssub.s32 128, 128
      %81 = vsyncadd [#allocation4], %s80
      %s83 = sshll.u32 [#allocation7], 4
      %s84 = int_to_ptr.vmem [resolvable:$true] %s83
      %86 = dma.vmem_to_hbm [thread:$0]  %s84, 128, %s2, [#allocation4]
    $region25: #{tpu_custom_call.1} parent=1 // pred_fallthru
      _
    // Predicated region
    $region26: #{tpu_custom_call.1} parent=1 // pred_check
      _
    $region27: #{tpu_custom_call.1} parent=1 // pred_check_branch
      %88 = sbr.rel (0) target = $region29
    $region28: #{tpu_custom_call.1} parent=1 // pred_region
      %89 = dma.done [#allocation4], 128
    $region29: #{tpu_custom_call.1} parent=1 // pred_fallthru
      _
    %90 = vsyncpa [#allocation3], 1
    %91 = vsyncpa [#allocation6], 1
    %92 = vsyncpa [#allocation4], 1

</llo_original>
